<compile_context>
chip_gen: v7x
topology: tpu7x:2x2x1
jax: 0.10.0
libtpu: 0.0.40
codegen_flags: <defaults>
</compile_context>

<pallas_src>
import jax
import jax.numpy as jnp
from jax.experimental import pallas as pl
from jax.experimental.pallas import tpu as pltpu


def _round_up(x, m):
    return ((x + m - 1) // m) * m


def _make_compare_kernel(E, merge_concat):
    def kernel(a_ref, beta_ref, b_ref, alpha_ref,
               w1_ref, b1_ref, w2_ref, b2_ref,
               va_ref, vb_ref):
        # TODO(synk): Dropout(0.2) layers are identity at inference time; omitted.

        def layer1(x_ref, y_ref):
            x = x_ref[...]
            y = y_ref[...]
            if merge_concat:
                # Single K=2E dot against the full W1 (fills more of the MXU
                # contraction depth than two K=E dots).
                xy = jnp.concatenate([x, y], axis=-1)
                h = jnp.dot(xy, w1_ref[...], preferred_element_type=jnp.float32)
            else:
                # relu(x@W1_top + y@W1_bot + b1) == relu(concat([x,y])@W1 + b1)
                h = (jnp.dot(x, w1_ref[:E, :], preferred_element_type=jnp.float32)
                     + jnp.dot(y, w1_ref[E:, :], preferred_element_type=jnp.float32))
            return jnp.maximum(h + b1_ref[...], 0.0)

        # Group same-RHS matmuls: both layer-1 dots (RHS = W1) ...
        h_a = layer1(a_ref, beta_ref)
        h_b = layer1(b_ref, alpha_ref)

        # ... then both layer-2 dots (RHS = W2).
        def layer2(h, out_ref):
            z = jnp.dot(h.astype(w2_ref.dtype), w2_ref[...],
                        preferred_element_type=jnp.float32) + b2_ref[...]
            out_ref[...] = jnp.maximum(z, 0.0).astype(out_ref.dtype)

        layer2(h_a, va_ref)
        layer2(h_b, vb_ref)

    return kernel


def _choose_tile_m(rows, E, Hp, act_bytes, max_tile_m, vmem_budget_bytes):
    """Largest row tile (multiple of 8) that fits the VMEM budget and still
    leaves >= ~4 grid steps (megacore sharding + DMA/compute overlap)."""
    weight_bytes = (2 * E * Hp + Hp * Hp) * act_bytes + 2 * Hp * 4
    per_row_bytes = 2 * (4 * E + 2 * Hp) * act_bytes  # 4 ins + 2 outs, double-buffered
    avail = max(vmem_budget_bytes - weight_bytes, 1 << 20)
    tile_by_vmem = max(8, (avail // per_row_bytes) // 8 * 8)
    tile_by_steps = max(8, _round_up(pl.cdiv(rows, 4), 8))
    return int(max(8, min(max_tile_m, tile_by_vmem, tile_by_steps)))


def compare_forward(A, B, beta, alpha, params, *,
                    max_tile_m=1024, vmem_budget_bytes=32 * 1024 * 1024):
    """Compare.forward.  A, beta: (bs, seq_a, E); B, alpha: (bs, seq_b, E).

    Output dtype follows the activation dtype (pass bf16 activations for a
    bandwidth-bound ~2x win; accumulation stays f32 inside the kernel).
    """
    w1, b1, w2, b2 = params
    bs, seq_a, E = A.shape
    bs_b, seq_b, E_b = B.shape
    assert bs_b == bs and E_b == E
    assert beta.shape == A.shape and alpha.shape == B.shape
    assert w1.shape[0] == 2 * E, "W1 must have 2*embed_size input features"
    H = w1.shape[1]
    assert w2.shape == (H, H)

    act_dtype = A.dtype
    act_bytes = jnp.dtype(act_dtype).itemsize

    # Pad hidden dim to a lane-dense multiple of 128: unmasked output stores,
    # full-width MXU N.  Zero-padded weight columns/rows keep the math exact.
    Hp = _round_up(H, 128)
    w1p = jnp.pad(w1.astype(act_dtype), ((0, 0), (0, Hp - H)))
    w2p = jnp.pad(w2.astype(act_dtype), ((0, Hp - H), (0, Hp - H)))
    # Biases stay f32 (added to the f32 accumulator); accept (H,) or (1, H).
    b1p = jnp.pad(jnp.reshape(b1, (1, H)).astype(jnp.float32), ((0, 0), (0, Hp - H)))
    b2p = jnp.pad(jnp.reshape(b2, (1, H)).astype(jnp.float32), ((0, 0), (0, Hp - H)))

    rows_a = bs * seq_a
    rows_b = bs * seq_b
    rows = max(rows_a, rows_b)

    a2 = A.reshape(rows_a, E)
    be2 = beta.reshape(rows_a, E)
    bb2 = B.reshape(rows_b, E)
    al2 = alpha.reshape(rows_b, E)
    # Explicitly pad the shorter pair to a common row count instead of relying
    # on block-index clamping of the last tile.
    if rows_a < rows:
        a2 = jnp.pad(a2, ((0, rows - rows_a), (0, 0)))
        be2 = jnp.pad(be2, ((0, rows - rows_a), (0, 0)))
    if rows_b < rows:
        bb2 = jnp.pad(bb2, ((0, rows - rows_b), (0, 0)))
        al2 = jnp.pad(al2, ((0, rows - rows_b), (0, 0)))

    tile_m = _choose_tile_m(rows, E, Hp, act_bytes, max_tile_m, vmem_budget_bytes)
    grid = (pl.cdiv(rows, tile_m),)

    # Explicit scoped-VMEM budget (headroom over the real working set; never
    # above 48 MiB so it is safe on v7x's 64 MiB physical VMEM).
    weight_bytes = (2 * E * Hp + Hp * Hp) * act_bytes + 2 * Hp * 4
    stream_bytes = 2 * tile_m * (4 * E + 2 * Hp) * act_bytes
    vmem_limit = int(min(48 << 20, max(2 * (weight_bytes + stream_bytes), 16 << 20)))

    # Advisory cost estimate so XLA can overlap this mem-bound call.
    flops = 2 * (rows_a + rows_b) * (2 * E * Hp + Hp * Hp)
    bytes_accessed = ((2 * (rows_a + rows_b) * E + (rows_a + rows_b) * Hp) * act_bytes
                      + weight_bytes)

    def act_spec():
        return pl.BlockSpec((tile_m, E), lambda i: (i, 0))

    def const_spec(shape):
        # Block index never changes -> fetched once, resident in VMEM all run.
        return pl.BlockSpec(shape, lambda i: (0, 0))

    kernel = _make_compare_kernel(E, merge_concat=(E < 128))

    va_pad, vb_pad = pl.pallas_call(
        kernel,
        out_shape=(jax.ShapeDtypeStruct((rows, Hp), act_dtype),
                   jax.ShapeDtypeStruct((rows, Hp), act_dtype)),
        grid_spec=pltpu.PrefetchScalarGridSpec(
            num_scalar_prefetch=0,
            grid=grid,
            in_specs=[
                act_spec(),                 # A rows
                act_spec(),                 # beta rows
                act_spec(),                 # B rows
                act_spec(),                 # alpha rows
                const_spec((2 * E, Hp)),    # W1 (padded)
                const_spec((1, Hp)),        # b1 (padded, f32)
                const_spec((Hp, Hp)),       # W2 (padded)
                const_spec((1, Hp)),        # b2 (padded, f32)
            ],
            out_specs=[
                pl.BlockSpec((tile_m, Hp), lambda i: (i, 0)),   # V_A
                pl.BlockSpec((tile_m, Hp), lambda i: (i, 0)),   # V_B
            ],
        ),
        compiler_params=pltpu.CompilerParams(
            dimension_semantics=("parallel",),
            vmem_limit_bytes=vmem_limit,
        ),
        cost_estimate=pl.CostEstimate(
            flops=int(flops), transcendentals=0, bytes_accessed=int(bytes_accessed)),
    )(a2, be2, bb2, al2, w1p, b1p, w2p, b2p)

    V_A = va_pad[:rows_a, :H].reshape(bs, seq_a, H)
    V_B = vb_pad[:rows_b, :H].reshape(bs, seq_b, H)
    return V_A, V_B


def init_compare_params(key, num_inputs, num_hiddens, dtype=jnp.float32):
    """Deterministic PyTorch-Linear-style uniform init; W stored as (in, out)."""
    k1, k2, k3, k4 = jax.random.split(key, 4)
    lim1 = 1.0 / (num_inputs ** 0.5)
    lim2 = 1.0 / (num_hiddens ** 0.5)
    w1 = jax.random.uniform(k1, (num_inputs, num_hiddens), dtype, -lim1, lim1)
    b1 = jax.random.uniform(k2, (1, num_hiddens), dtype, -lim1, lim1)
    w2 = jax.random.uniform(k3, (num_hiddens, num_hiddens), dtype, -lim2, lim2)
    b2 = jax.random.uniform(k4, (1, num_hiddens), dtype, -lim2, lim2)
    return w1, b1, w2, b2


if __name__ == "__main__":
    key = jax.random.PRNGKey(0)
    bs, seq_a, seq_b = 2, 8, 6           # seq_a != seq_b exercises the row-pad path
    embed_size, num_hiddens = 32, 32
    num_inputs = 2 * embed_size          # Compare sees concat([A, beta], dim=2)

    kA, kB, kbeta, kalpha, kparams = jax.random.split(key, 5)
    A = jax.random.normal(kA, (bs, seq_a, embed_size), jnp.float32)
    B = jax.random.normal(kB, (bs, seq_b, embed_size), jnp.float32)
    beta = jax.random.normal(kbeta, (bs, seq_a, embed_size), jnp.float32)
    alpha = jax.random.normal(kalpha, (bs, seq_b, embed_size), jnp.float32)

    params = init_compare_params(kparams, num_inputs, num_hiddens)
    w1, b1, w2, b2 = params

    # Pure-JAX reference following the PyTorch module literally (with concat).
    def ref_g(x2d):
        h = jnp.maximum(
            jnp.dot(x2d, w1, precision=jax.lax.Precision.HIGHEST) + b1, 0.0)
        return jnp.maximum(
            jnp.dot(h, w2, precision=jax.lax.Precision.HIGHEST) + b2, 0.0)

    xa = jnp.concatenate([A, beta], axis=2).reshape(bs * seq_a, num_inputs)
    xb = jnp.concatenate([B, alpha], axis=2).reshape(bs * seq_b, num_inputs)
    ref_VA = ref_g(xa).reshape(bs, seq_a, num_hiddens)
    ref_VB = ref_g(xb).reshape(bs, seq_b, num_hiddens)

    # f32 path (matches PyTorch semantics exactly).
    V_A, V_B = compare_forward(A, B, beta, alpha, params)
    jax.block_until_ready((V_A, V_B))
    assert V_A.shape == (bs, seq_a, num_hiddens)
    assert V_B.shape == (bs, seq_b, num_hiddens)
    assert jnp.allclose(V_A, ref_VA, atol=1e-4, rtol=1e-4)
    assert jnp.allclose(V_B, ref_VB, atol=1e-4, rtol=1e-4)

    # bf16 I/O path (halves HBM traffic; f32 accumulation inside the kernel).
    bf = jnp.bfloat16
    V_A16, V_B16 = compare_forward(A.astype(bf), B.astype(bf),
                                   beta.astype(bf), alpha.astype(bf), params)
    jax.block_until_ready((V_A16, V_B16))
    assert V_A16.dtype == bf and V_B16.dtype == bf
    assert jnp.allclose(V_A16.astype(jnp.float32), ref_VA, atol=1e-1, rtol=1e-1)
    assert jnp.allclose(V_B16.astype(jnp.float32), ref_VB, atol=1e-1, rtol=1e-1)

    print("KERNEL_OK")
</pallas_src>

<mosaic_0001>
module attributes {stable_mosaic.version = 11 : i64} {
  func.func @kernel(%arg0: i32, %arg1: memref<8x32xf32, #tpu.memory_space<vmem>>, %arg2: memref<8x32xf32, #tpu.memory_space<vmem>>, %arg3: memref<8x32xf32, #tpu.memory_space<vmem>>, %arg4: memref<8x32xf32, #tpu.memory_space<vmem>>, %arg5: memref<64x128xf32, #tpu.memory_space<vmem>>, %arg6: memref<1x128xf32, #tpu.memory_space<vmem>>, %arg7: memref<128x128xf32, #tpu.memory_space<vmem>>, %arg8: memref<1x128xf32, #tpu.memory_space<vmem>>, %arg9: memref<8x128xf32, #tpu.memory_space<vmem>>, %arg10: memref<8x128xf32, #tpu.memory_space<vmem>>) attributes {dimension_semantics = [#tpu.dimension_semantics<parallel>], iteration_bounds = array<i64: 2>, scalar_prefetch = 0 : i64, scratch_operands = 0 : i64, tpu.core_type = #tpu.core_type<tc>, window_params = [{transform_indices = @transform_0, window_bounds = array<i64: 8, 32>}, {transform_indices = @transform_1, window_bounds = array<i64: 8, 32>}, {transform_indices = @transform_2, window_bounds = array<i64: 8, 32>}, {transform_indices = @transform_3, window_bounds = array<i64: 8, 32>}, {pipeline_mode = #tpu.pipeline_mode<synchronous>, transform_indices = @transform_4, window_bounds = array<i64: 64, 128>}, {pipeline_mode = #tpu.pipeline_mode<synchronous>, transform_indices = @transform_5, window_bounds = array<i64: 1, 128>}, {pipeline_mode = #tpu.pipeline_mode<synchronous>, transform_indices = @transform_6, window_bounds = array<i64: 128, 128>}, {pipeline_mode = #tpu.pipeline_mode<synchronous>, transform_indices = @transform_7, window_bounds = array<i64: 1, 128>}, {transform_indices = @transform_8, window_bounds = array<i64: 8, 128>}, {transform_indices = @transform_9, window_bounds = array<i64: 8, 128>}]} {
    %c0 = arith.constant 0 : index
    %c0_0 = arith.constant 0 : index
    %0 = vector.load %arg1[%c0, %c0_0] : memref<8x32xf32, #tpu.memory_space<vmem>>, vector<8x32xf32>
    %c0_1 = arith.constant 0 : index
    %c0_2 = arith.constant 0 : index
    %1 = vector.load %arg2[%c0_1, %c0_2] : memref<8x32xf32, #tpu.memory_space<vmem>>, vector<8x32xf32>
    %2 = tpu.concatenate %0, %1 in 1 : vector<8x32xf32>, vector<8x32xf32> -> vector<8x64xf32>
    %c0_3 = arith.constant 0 : index
    %c0_4 = arith.constant 0 : index
    %3 = vector.load %arg5[%c0_3, %c0_4] : memref<64x128xf32, #tpu.memory_space<vmem>>, vector<64x128xf32>
    %cst = arith.constant dense<0.000000e+00> : vector<8x128xf32>
    %4 = tpu.matmul %2, %3, %cst {dimension_numbers = #tpu.dot_dimension_numbers<[1], [0], [0], [1], [0, 0, 1, 1], [], []>} : vector<8x64xf32>, vector<64x128xf32>, vector<8x128xf32> -> vector<8x128xf32>
    %c0_5 = arith.constant 0 : index
    %c0_6 = arith.constant 0 : index
    %5 = vector.load %arg6[%c0_5, %c0_6] : memref<1x128xf32, #tpu.memory_space<vmem>>, vector<1x128xf32>
    %6 = vector.broadcast %5 : vector<1x128xf32> to vector<8x128xf32>
    %7 = arith.addf %4, %6 : vector<8x128xf32>
    %cst_7 = arith.constant 0.000000e+00 : f32
    %8 = vector.broadcast %cst_7 : f32 to vector<8x128xf32>
    %9 = arith.maximumf %7, %8 : vector<8x128xf32>
    %c0_8 = arith.constant 0 : index
    %c0_9 = arith.constant 0 : index
    %10 = vector.load %arg3[%c0_8, %c0_9] : memref<8x32xf32, #tpu.memory_space<vmem>>, vector<8x32xf32>
    %c0_10 = arith.constant 0 : index
    %c0_11 = arith.constant 0 : index
    %11 = vector.load %arg4[%c0_10, %c0_11] : memref<8x32xf32, #tpu.memory_space<vmem>>, vector<8x32xf32>
    %12 = tpu.concatenate %10, %11 in 1 : vector<8x32xf32>, vector<8x32xf32> -> vector<8x64xf32>
    %c0_12 = arith.constant 0 : index
    %c0_13 = arith.constant 0 : index
    %13 = vector.load %arg5[%c0_12, %c0_13] : memref<64x128xf32, #tpu.memory_space<vmem>>, vector<64x128xf32>
    %cst_14 = arith.constant dense<0.000000e+00> : vector<8x128xf32>
    %14 = tpu.matmul %12, %13, %cst_14 {dimension_numbers = #tpu.dot_dimension_numbers<[1], [0], [0], [1], [0, 0, 1, 1], [], []>} : vector<8x64xf32>, vector<64x128xf32>, vector<8x128xf32> -> vector<8x128xf32>
    %c0_15 = arith.constant 0 : index
    %c0_16 = arith.constant 0 : index
    %15 = vector.load %arg6[%c0_15, %c0_16] : memref<1x128xf32, #tpu.memory_space<vmem>>, vector<1x128xf32>
    %16 = vector.broadcast %15 : vector<1x128xf32> to vector<8x128xf32>
    %17 = arith.addf %14, %16 : vector<8x128xf32>
    %cst_17 = arith.constant 0.000000e+00 : f32
    %18 = vector.broadcast %cst_17 : f32 to vector<8x128xf32>
    %19 = arith.maximumf %17, %18 : vector<8x128xf32>
    %c0_18 = arith.constant 0 : index
    %c0_19 = arith.constant 0 : index
    %20 = vector.load %arg7[%c0_18, %c0_19] : memref<128x128xf32, #tpu.memory_space<vmem>>, vector<128x128xf32>
    %cst_20 = arith.constant dense<0.000000e+00> : vector<8x128xf32>
    %21 = tpu.matmul %9, %20, %cst_20 {dimension_numbers = #tpu.dot_dimension_numbers<[1], [0], [0], [1], [0, 0, 1, 1], [], []>} : vector<8x128xf32>, vector<128x128xf32>, vector<8x128xf32> -> vector<8x128xf32>
    %c0_21 = arith.constant 0 : index
    %c0_22 = arith.constant 0 : index
    %22 = vector.load %arg8[%c0_21, %c0_22] : memref<1x128xf32, #tpu.memory_space<vmem>>, vector<1x128xf32>
    %23 = vector.broadcast %22 : vector<1x128xf32> to vector<8x128xf32>
    %24 = arith.addf %21, %23 : vector<8x128xf32>
    %cst_23 = arith.constant 0.000000e+00 : f32
    %25 = vector.broadcast %cst_23 : f32 to vector<8x128xf32>
    %26 = arith.maximumf %24, %25 : vector<8x128xf32>
    %c0_24 = arith.constant 0 : index
    %c0_25 = arith.constant 0 : index
    %27 = vector.load %arg9[%c0_24, %c0_25] : memref<8x128xf32, #tpu.memory_space<vmem>>, vector<8x128xf32>
    tpu.vector_store %arg9[%c0_24, %c0_25], %26 {strides = array<i32>} : memref<8x128xf32, #tpu.memory_space<vmem>>, vector<8x128xf32>,
    %c0_26 = arith.constant 0 : index
    %c0_27 = arith.constant 0 : index
    %28 = vector.load %arg7[%c0_26, %c0_27] : memref<128x128xf32, #tpu.memory_space<vmem>>, vector<128x128xf32>
    %cst_28 = arith.constant dense<0.000000e+00> : vector<8x128xf32>
    %29 = tpu.matmul %19, %28, %cst_28 {dimension_numbers = #tpu.dot_dimension_numbers<[1], [0], [0], [1], [0, 0, 1, 1], [], []>} : vector<8x128xf32>, vector<128x128xf32>, vector<8x128xf32> -> vector<8x128xf32>
    %c0_29 = arith.constant 0 : index
    %c0_30 = arith.constant 0 : index
    %30 = vector.load %arg8[%c0_29, %c0_30] : memref<1x128xf32, #tpu.memory_space<vmem>>, vector<1x128xf32>
    %31 = vector.broadcast %30 : vector<1x128xf32> to vector<8x128xf32>
    %32 = arith.addf %29, %31 : vector<8x128xf32>
    %cst_31 = arith.constant 0.000000e+00 : f32
    %33 = vector.broadcast %cst_31 : f32 to vector<8x128xf32>
    %34 = arith.maximumf %32, %33 : vector<8x128xf32>
    %c0_32 = arith.constant 0 : index
    %c0_33 = arith.constant 0 : index
    %35 = vector.load %arg10[%c0_32, %c0_33] : memref<8x128xf32, #tpu.memory_space<vmem>>, vector<8x128xf32>
    tpu.vector_store %arg10[%c0_32, %c0_33], %34 {strides = array<i32>} : memref<8x128xf32, #tpu.memory_space<vmem>>, vector<8x128xf32>,
    return
  }
  func.func @transform_0(%arg0: i32) -> (i32, i32) {
    %c0_i32 = arith.constant 0 : i32
    %c0_i32_0 = arith.constant 0 : i32
    return %arg0, %c0_i32 : i32, i32
  }
  func.func @transform_1(%arg0: i32) -> (i32, i32) {
    %c0_i32 = arith.constant 0 : i32
    %c0_i32_0 = arith.constant 0 : i32
    return %arg0, %c0_i32 : i32, i32
  }
  func.func @transform_2(%arg0: i32) -> (i32, i32) {
    %c0_i32 = arith.constant 0 : i32
    %c0_i32_0 = arith.constant 0 : i32
    return %arg0, %c0_i32 : i32, i32
  }
  func.func @transform_3(%arg0: i32) -> (i32, i32) {
    %c0_i32 = arith.constant 0 : i32
    %c0_i32_0 = arith.constant 0 : i32
    return %arg0, %c0_i32 : i32, i32
  }
  func.func @transform_4(%arg0: i32) -> (i32, i32) {
    %c0_i32 = arith.constant 0 : i32
    %c0_i32_0 = arith.constant 0 : i32
    %c0_i32_1 = arith.constant 0 : i32
    return %c0_i32, %c0_i32_0 : i32, i32
  }
  func.func @transform_5(%arg0: i32) -> (i32, i32) {
    %c0_i32 = arith.constant 0 : i32
    %c0_i32_0 = arith.constant 0 : i32
    %c0_i32_1 = arith.constant 0 : i32
    return %c0_i32, %c0_i32_0 : i32, i32
  }
  func.func @transform_6(%arg0: i32) -> (i32, i32) {
    %c0_i32 = arith.constant 0 : i32
    %c0_i32_0 = arith.constant 0 : i32
    %c0_i32_1 = arith.constant 0 : i32
    return %c0_i32, %c0_i32_0 : i32, i32
  }
  func.func @transform_7(%arg0: i32) -> (i32, i32) {
    %c0_i32 = arith.constant 0 : i32
    %c0_i32_0 = arith.constant 0 : i32
    %c0_i32_1 = arith.constant 0 : i32
    return %c0_i32, %c0_i32_0 : i32, i32
  }
  func.func @transform_8(%arg0: i32) -> (i32, i32) {
    %c0_i32 = arith.constant 0 : i32
    %c0_i32_0 = arith.constant 0 : i32
    return %arg0, %c0_i32 : i32, i32
  }
  func.func @transform_9(%arg0: i32) -> (i32, i32) {
    %c0_i32 = arith.constant 0 : i32
    %c0_i32_0 = arith.constant 0 : i32
    return %arg0, %c0_i32 : i32, i32
  }
}

</mosaic_0001>

<llo_original>
// kernel: tpu_custom_call.1
$region0: #{tpu_custom_call.1}
  #allocation0 [shape = 'u32[]', space=smem, size = 0x4, offset = 0x4, fixed_abs, tag = 'smem constant byte address 0x4 - core index']
  #allocation1 [shape = 'u32[144,128]{1,0:T(1,128)}', space=vmem, size = 0x12000, scoped, tag = 'internal scratch']
  %s0 = inlined_call_operand.hbm [shape: f32[16,32], index: 0, kind: input, shape index: {}]
  %s1 = inlined_call_operand.hbm [shape: f32[16,32], index: 1, kind: input, shape index: {}]
  %s2 = inlined_call_operand.hbm [shape: f32[16,32], index: 2, kind: input, shape index: {}]
  %s3 = inlined_call_operand.hbm [shape: f32[16,32], index: 3, kind: input, shape index: {}]
  %s4 = inlined_call_operand.hbm [shape: f32[64,128], index: 4, kind: input, shape index: {}]
  %s5 = inlined_call_operand.vmem [shape: f32[1,128], index: 5, kind: input, shape index: {}]
  %s6 = inlined_call_operand.hbm [shape: f32[128,128], index: 6, kind: input, shape index: {}]
  %s7 = inlined_call_operand.vmem [shape: f32[1,128], index: 7, kind: input, shape index: {}]
  %s8 = inlined_call_operand.hbm [shape: f32[16,128], index: 8, kind: output, shape index: {0}]
  %s9 = inlined_call_operand.hbm [shape: f32[16,128], index: 9, kind: output, shape index: {1}]
  %10 = xla_tuple %s8, %s9
  %s11 = sld [smem:[#allocation0]]
  $region97: #{tpu_custom_call.1} parent=0
    _
  %s13 = ssub.s32 1, %s11
  %s14 = scalar_select 0, %s13, %s11
  $region1: #{tpu_custom_call.1} parent=0
    #allocation2 [shape = 'u8[8192]{0}', space=vmem, size = 0x2000, scoped, tag = 'input window, operand 0']
    #allocation3 [shape = 's32[2]{0}', space=sflag, size = 0x8, scoped, tag = 'scoped memory for tpu_custom_call.1']
    #allocation4 [shape = 's32[2]{0}', space=sflag, size = 0x8, scoped, tag = 'scoped memory for tpu_custom_call.1']
    #allocation5 [shape = 'u8[8192]{0}', space=vmem, size = 0x2000, scoped, tag = 'input window, operand 1']
    #allocation6 [shape = 's32[2]{0}', space=sflag, size = 0x8, scoped, tag = 'scoped memory for tpu_custom_call.1']
    #allocation7 [shape = 'u8[8192]{0}', space=vmem, size = 0x2000, scoped, tag = 'input window, operand 2']
    #allocation8 [shape = 'u8[8192]{0}', space=vmem, size = 0x2000, scoped, tag = 'input window, operand 3']
    #allocation9 [shape = 's32[2]{0}', space=sflag, size = 0x8, scoped, tag = 'scoped memory for tpu_custom_call.1']
    #allocation10 [shape = 'u8[32768]{0}', space=vmem, size = 0x8000, scoped, tag = 'input window, operand 4, single buffered']
    #allocation11 [shape = 'u8[65536]{0}', space=vmem, size = 0x10000, scoped, tag = 'input window, operand 6, single buffered']
    #allocation12 [shape = 's32[1]{0}', space=sflag, size = 0x4, scoped, tag = 'scoped memory for tpu_custom_call.1']
    #allocation13 [shape = 'u8[8192]{0}', space=vmem, size = 0x2000, scoped, tag = 'output window, operand 0']
    #allocation14 [shape = 'u8[8192]{0}', space=vmem, size = 0x2000, scoped, tag = 'output window, operand 1']
    #allocation15 [shape = 's32[2]{0}', space=sflag, size = 0x8, scoped, tag = 'scoped memory for tpu_custom_call.1']
    %15 = vsyncpa [#allocation3], 0
    %s16 = scalar_lea.sflag [#allocation3], 1
    %17 = vsyncpa %s16, 0
    %18 = vsyncpa [#allocation6], 0
    %s19 = scalar_lea.sflag [#allocation6], 1
    %20 = vsyncpa %s19, 0
    %21 = vsyncpa [#allocation9], 0
    %s22 = scalar_lea.sflag [#allocation9], 1
    %23 = vsyncpa %s22, 0
    %24 = vsyncpa [#allocation12], 0
    %25 = vsyncpa [#allocation4], 0
    %s26 = scalar_lea.sflag [#allocation4], 1
    %27 = vsyncpa %s26, 0
    %28 = vsyncpa [#allocation15], 0
    %s29 = scalar_lea.sflag [#allocation15], 1
    %30 = vsyncpa %s29, 0
    loop: start=0, step=1, limit=4
    $region2: #{tpu_custom_call.1} parent=1 // loop_pre_header
      _
    $region3: #{tpu_custom_call.1} parent=1 // loop_header
      %s32 = sphi 0, %s36
      %p33 = scmp.ge.s32.totalorder %s32, 4
      %s42 = sphi 0, %s44
      %s45 = sphi 0, %s42
      %s46 = sphi 0, %s45
      %s62 = sphi 0, %s46
      %s68 = sphi 0, %s70
      %s71 = sphi 0, %s68
      %s72 = sphi 0, %s71
      %s88 = sphi 0, %s72
      %s94 = sphi 0, %s96
      %s97 = sphi 0, %s94
      %s98 = sphi 0, %s97
      %s114 = sphi 0, %s98
      %s120 = sphi 0, %s122
      %s123 = sphi 0, %s120
      %s124 = sphi 0, %s123
      %s140 = sphi 0, %s124
      %s144 = sphi 0, %s144
      %s146 = sphi 0, %s144
      %s147 = sphi 0, %s146
      %s161 = sphi 0, %s147
      %s165 = sphi 0, %s165
      %s167 = sphi 0, %s165
      %s168 = sphi 0, %s167
      %s182 = sphi 0, %s168
      %s186 = sphi 0, %s186
      %s188 = sphi 0, %s186
      %s189 = sphi 0, %s188
      %s203 = sphi 0, %s189
      %s207 = sphi 0, %s207
      %s209 = sphi 0, %s207
      %s210 = sphi 0, %s209
      %s224 = sphi 0, %s210
      %s230 = sphi 0, %s232
      %s233 = sphi 0, %s230
      %s234 = sphi 0, %s233
      %s250 = sphi 0, %s234
      %s256 = sphi 0, %s258
      %s259 = sphi 0, %s256
      %s260 = sphi 0, %s259
      %s276 = sphi 0, %s260
    $region4: #{tpu_custom_call.1} parent=1 // loop_header_branch
      %35 = sbr.rel (%p33) target = $region8
    $region5: #{tpu_custom_call.1} parent=1 // loop_body
      %s37 = ssub.s32 %s32, 1
      %s38 = ssub.s32 %s32, 2
      %s39 = sadd.s32 %s32, 1
      %s40 = ssub.s32 %s32, %s39
      %p41 = scmp.eq.s32.totalorder %s40, 0
      %s43 = sadd.s32 %s42, 1
      %s44 = scalar_select %p41, %s42, %s43
      %p47 = pneg %p41
      %p48 = scmp.eq.s32.totalorder %s32, 1
      %p49 = por %p47, %p48
      %p50 = scmp.ne.s32.totalorder %s42, %s45
      %p51 = scmp.eq.s32.totalorder %s32, 0
      %p52 = por %p50, %p51
      %p53 = scmp.ne.s32.totalorder %s42, %s45
      %p54 = scmp.eq.s32.totalorder %s37, 1
      %p55 = por %p53, %p54
      %p56 = scmp.ne.s32.totalorder %s45, %s46
      %p57 = scmp.eq.s32.totalorder %s37, 0
      %p58 = por %p56, %p57
      %p59 = scmp.ne.s32.totalorder %s45, %s46
      %p60 = scmp.eq.s32.totalorder %s38, 1
      %p61 = por %p59, %p60
      %p63 = scmp.ne.s32.totalorder %s46, %s62
      %p64 = scmp.eq.s32.totalorder %s38, 0
      %p65 = por %p63, %p64
      %s66 = ssub.s32 %s32, %s39
      %p67 = scmp.eq.s32.totalorder %s66, 0
      %s69 = sadd.s32 %s68, 1
      %s70 = scalar_select %p67, %s68, %s69
      %p73 = pneg %p67
      %p74 = scmp.eq.s32.totalorder %s32, 1
      %p75 = por %p73, %p74
      %p76 = scmp.ne.s32.totalorder %s68, %s71
      %p77 = scmp.eq.s32.totalorder %s32, 0
      %p78 = por %p76, %p77
      %p79 = scmp.ne.s32.totalorder %s68, %s71
      %p80 = scmp.eq.s32.totalorder %s37, 1
      %p81 = por %p79, %p80
      %p82 = scmp.ne.s32.totalorder %s71, %s72
      %p83 = scmp.eq.s32.totalorder %s37, 0
      %p84 = por %p82, %p83
      %p85 = scmp.ne.s32.totalorder %s71, %s72
      %p86 = scmp.eq.s32.totalorder %s38, 1
      %p87 = por %p85, %p86
      %p89 = scmp.ne.s32.totalorder %s72, %s88
      %p90 = scmp.eq.s32.totalorder %s38, 0
      %p91 = por %p89, %p90
      %s92 = ssub.s32 %s32, %s39
      %p93 = scmp.eq.s32.totalorder %s92, 0
      %s95 = sadd.s32 %s94, 1
      %s96 = scalar_select %p93, %s94, %s95
      %p99 = pneg %p93
      %p100 = scmp.eq.s32.totalorder %s32, 1
      %p101 = por %p99, %p100
      %p102 = scmp.ne.s32.totalorder %s94, %s97
      %p103 = scmp.eq.s32.totalorder %s32, 0
      %p104 = por %p102, %p103
      %p105 = scmp.ne.s32.totalorder %s94, %s97
      %p106 = scmp.eq.s32.totalorder %s37, 1
      %p107 = por %p105, %p106
      %p108 = scmp.ne.s32.totalorder %s97, %s98
      %p109 = scmp.eq.s32.totalorder %s37, 0
      %p110 = por %p108, %p109
      %p111 = scmp.ne.s32.totalorder %s97, %s98
      %p112 = scmp.eq.s32.totalorder %s38, 1
      %p113 = por %p111, %p112
      %p115 = scmp.ne.s32.totalorder %s98, %s114
      %p116 = scmp.eq.s32.totalorder %s38, 0
      %p117 = por %p115, %p116
      %s118 = ssub.s32 %s32, %s39
      %p119 = scmp.eq.s32.totalorder %s118, 0
      %s121 = sadd.s32 %s120, 1
      %s122 = scalar_select %p119, %s120, %s121
      %p125 = pneg %p119
      %p126 = scmp.eq.s32.totalorder %s32, 1
      %p127 = por %p125, %p126
      %p128 = scmp.ne.s32.totalorder %s120, %s123
      %p129 = scmp.eq.s32.totalorder %s32, 0
      %p130 = por %p128, %p129
      %p131 = scmp.ne.s32.totalorder %s120, %s123
      %p132 = scmp.eq.s32.totalorder %s37, 1
      %p133 = por %p131, %p132
      %p134 = scmp.ne.s32.totalorder %s123, %s124
      %p135 = scmp.eq.s32.totalorder %s37, 0
      %p136 = por %p134, %p135
      %p137 = scmp.ne.s32.totalorder %s123, %s124
      %p138 = scmp.eq.s32.totalorder %s38, 1
      %p139 = por %p137, %p138
      %p141 = scmp.ne.s32.totalorder %s124, %s140
      %p142 = scmp.eq.s32.totalorder %s38, 0
      %p143 = por %p141, %p142
      %s145 = sadd.s32 %s144, 1
      %p148 = scmp.eq.s32.totalorder %s32, 1
      %p149 = scmp.ne.s32.totalorder %s144, %s146
      %p150 = scmp.eq.s32.totalorder %s32, 0
      %p151 = por %p149, %p150
      %p152 = scmp.ne.s32.totalorder %s144, %s146
      %p153 = scmp.eq.s32.totalorder %s37, 1
      %p154 = por %p152, %p153
      %p155 = scmp.ne.s32.totalorder %s146, %s147
      %p156 = scmp.eq.s32.totalorder %s37, 0
      %p157 = por %p155, %p156
      %p158 = scmp.ne.s32.totalorder %s146, %s147
      %p159 = scmp.eq.s32.totalorder %s38, 1
      %p160 = por %p158, %p159
      %p162 = scmp.ne.s32.totalorder %s147, %s161
      %p163 = scmp.eq.s32.totalorder %s38, 0
      %p164 = por %p162, %p163
      %s166 = sadd.s32 %s165, 1
      %p169 = scmp.eq.s32.totalorder %s32, 1
      %p170 = scmp.ne.s32.totalorder %s165, %s167
      %p171 = scmp.eq.s32.totalorder %s32, 0
      %p172 = por %p170, %p171
      %p173 = scmp.ne.s32.totalorder %s165, %s167
      %p174 = scmp.eq.s32.totalorder %s37, 1
      %p175 = por %p173, %p174
      %p176 = scmp.ne.s32.totalorder %s167, %s168
      %p177 = scmp.eq.s32.totalorder %s37, 0
      %p178 = por %p176, %p177
      %p179 = scmp.ne.s32.totalorder %s167, %s168
      %p180 = scmp.eq.s32.totalorder %s38, 1
      %p181 = por %p179, %p180
      %p183 = scmp.ne.s32.totalorder %s168, %s182
      %p184 = scmp.eq.s32.totalorder %s38, 0
      %p185 = por %p183, %p184
      %s187 = sadd.s32 %s186, 1
      %p190 = scmp.eq.s32.totalorder %s32, 1
      %p191 = scmp.ne.s32.totalorder %s186, %s188
      %p192 = scmp.eq.s32.totalorder %s32, 0
      %p193 = por %p191, %p192
      %p194 = scmp.ne.s32.totalorder %s186, %s188
      %p195 = scmp.eq.s32.totalorder %s37, 1
      %p196 = por %p194, %p195
      %p197 = scmp.ne.s32.totalorder %s188, %s189
      %p198 = scmp.eq.s32.totalorder %s37, 0
      %p199 = por %p197, %p198
      %p200 = scmp.ne.s32.totalorder %s188, %s189
      %p201 = scmp.eq.s32.totalorder %s38, 1
      %p202 = por %p200, %p201
      %p204 = scmp.ne.s32.totalorder %s189, %s203
      %p205 = scmp.eq.s32.totalorder %s38, 0
      %p206 = por %p204, %p205
      %s208 = sadd.s32 %s207, 1
      %p211 = scmp.eq.s32.totalorder %s32, 1
      %p212 = scmp.ne.s32.totalorder %s207, %s209
      %p213 = scmp.eq.s32.totalorder %s32, 0
      %p214 = por %p212, %p213
      %p215 = scmp.ne.s32.totalorder %s207, %s209
      %p216 = scmp.eq.s32.totalorder %s37, 1
      %p217 = por %p215, %p216
      %p218 = scmp.ne.s32.totalorder %s209, %s210
      %p219 = scmp.eq.s32.totalorder %s37, 0
      %p220 = por %p218, %p219
      %p221 = scmp.ne.s32.totalorder %s209, %s210
      %p222 = scmp.eq.s32.totalorder %s38, 1
      %p223 = por %p221, %p222
      %p225 = scmp.ne.s32.totalorder %s210, %s224
      %p226 = scmp.eq.s32.totalorder %s38, 0
      %p227 = por %p225, %p226
      %s228 = ssub.s32 %s32, %s39
      %p229 = scmp.eq.s32.totalorder %s228, 0
      %s231 = sadd.s32 %s230, 1
      %s232 = scalar_select %p229, %s230, %s231
      %p235 = pneg %p229
      %p236 = scmp.eq.s32.totalorder %s32, 1
      %p237 = por %p235, %p236
      %p238 = scmp.ne.s32.totalorder %s230, %s233
      %p239 = scmp.eq.s32.totalorder %s32, 0
      %p240 = por %p238, %p239
      %p241 = scmp.ne.s32.totalorder %s230, %s233
      %p242 = scmp.eq.s32.totalorder %s37, 1
      %p243 = por %p241, %p242
      %p244 = scmp.ne.s32.totalorder %s233, %s234
      %p245 = scmp.eq.s32.totalorder %s37, 0
      %p246 = por %p244, %p245
      %p247 = scmp.ne.s32.totalorder %s233, %s234
      %p248 = scmp.eq.s32.totalorder %s38, 1
      %p249 = por %p247, %p248
      %p251 = scmp.ne.s32.totalorder %s234, %s250
      %p252 = scmp.eq.s32.totalorder %s38, 0
      %p253 = por %p251, %p252
      %s254 = ssub.s32 %s32, %s39
      %p255 = scmp.eq.s32.totalorder %s254, 0
      %s257 = sadd.s32 %s256, 1
      %s258 = scalar_select %p255, %s256, %s257
      %p261 = pneg %p255
      %p262 = scmp.eq.s32.totalorder %s32, 1
      %p263 = por %p261, %p262
      %p264 = scmp.ne.s32.totalorder %s256, %s259
      %p265 = scmp.eq.s32.totalorder %s32, 0
      %p266 = por %p264, %p265
      %p267 = scmp.ne.s32.totalorder %s256, %s259
      %p268 = scmp.eq.s32.totalorder %s37, 1
      %p269 = por %p267, %p268
      %p270 = scmp.ne.s32.totalorder %s259, %s260
      %p271 = scmp.eq.s32.totalorder %s37, 0
      %p272 = por %p270, %p271
      %p273 = scmp.ne.s32.totalorder %s259, %s260
      %p274 = scmp.eq.s32.totalorder %s38, 1
      %p275 = por %p273, %p274
      %p277 = scmp.ne.s32.totalorder %s260, %s276
      %p278 = scmp.eq.s32.totalorder %s38, 0
      %p279 = por %p277, %p278
      %p280 = scmp.le.s32.totalorder 1, %s32
      %p281 = scmp.lt.s32.totalorder %s32, 3
      %p282 = pnand %p280, %p281
      %p283 = pneg %p282
      // Predicated region
      $region9: #{tpu_custom_call.1} parent=5 // pred_check
        _
      $region10: #{tpu_custom_call.1} parent=5 // pred_check_branch
        %285 = sbr.rel (%p282) target = $region12
      $region11: #{tpu_custom_call.1} parent=5 // pred_region
        %s286 = ssub.s32 %s32, 1
        // Predicated region
        $region13: #{tpu_custom_call.1} parent=11 // pred_check
          %p287 = pneg %p157
        $region14: #{tpu_custom_call.1} parent=11 // pred_check_branch
          %289 = sbr.rel (%p287) target = $region16
        $region15: #{tpu_custom_call.1} parent=11 // pred_region
          %s291 = ssub.s32 1024, 1024
          %292 = vsyncadd [#allocation9], %s291
          %s293 = sshll.u32 [#allocation10], 4
          %s294 = int_to_ptr.vmem [resolvable:$true] %s293
          %299 = dma.hbm_to_vmem [thread:$0]  %s4, 1024, %s294, [#allocation9], 128, 128, 8
        $region16: #{tpu_custom_call.1} parent=11 // pred_fallthru
          _
        // Predicated region
        $region17: #{tpu_custom_call.1} parent=11 // pred_check
          %p300 = pneg %p178
        $region18: #{tpu_custom_call.1} parent=11 // pred_check_branch
          %302 = sbr.rel (%p300) target = $region20
        $region19: #{tpu_custom_call.1} parent=11 // pred_region
          _
        $region20: #{tpu_custom_call.1} parent=11 // pred_fallthru
          _
        // Predicated region
        $region21: #{tpu_custom_call.1} parent=11 // pred_check
          %p303 = pneg %p199
        $region22: #{tpu_custom_call.1} parent=11 // pred_check_branch
          %305 = sbr.rel (%p303) target = $region24
        $region23: #{tpu_custom_call.1} parent=11 // pred_region
          %s307 = ssub.s32 2048, 2048
          %308 = vsyncadd [#allocation12], %s307
          %s309 = sshll.u32 [#allocation11], 4
          %s310 = int_to_ptr.vmem [resolvable:$true] %s309
          %315 = dma.hbm_to_vmem [thread:$0]  %s6, 2048, %s310, [#allocation12], 128, 128, 8
        $region24: #{tpu_custom_call.1} parent=11 // pred_fallthru
          _
        // Predicated region
        $region25: #{tpu_custom_call.1} parent=11 // pred_check
          %p316 = pneg %p220
        $region26: #{tpu_custom_call.1} parent=11 // pred_check_branch
          %318 = sbr.rel (%p316) target = $region28
        $region27: #{tpu_custom_call.1} parent=11 // pred_region
          _
        $region28: #{tpu_custom_call.1} parent=11 // pred_fallthru
          _
      $region12: #{tpu_custom_call.1} parent=5 // pred_fallthru
        _
      %p319 = scmp.lt.s32.totalorder %s32, 2
      // Predicated region
      $region29: #{tpu_custom_call.1} parent=5 // pred_check
        %p320 = pneg %p319
      $region30: #{tpu_custom_call.1} parent=5 // pred_check_branch
        %322 = sbr.rel (%p320) target = $region32
      $region31: #{tpu_custom_call.1} parent=5 // pred_region
        // Predicated region
        $region33: #{tpu_custom_call.1} parent=31 // pred_check
          %p323 = pneg %p52
        $region34: #{tpu_custom_call.1} parent=31 // pred_check_branch
          %325 = sbr.rel (%p323) target = $region36
        $region35: #{tpu_custom_call.1} parent=31 // pred_region
          %s326 = sand.u32 %s42, 1
          %s327 = scalar_lea.sflag [#allocation3], %s326
          %s328 = sand.u32 %s42, 1
          %s329 = smul.addr %s328, 8
          %s330 = scalar_lea.vmem [#allocation2], %s329
          %s332 = ssub.s32 128, 128
          %333 = vsyncadd %s327, %s332
          %s334 = smul.addr %s32, 128
          %s335 = scalar_lea.hbm %s0, %s334
          %s337 = sshll.u32 %s330, 4
          %s338 = int_to_ptr.vmem [resolvable:$true] %s337
          %340 = dma.hbm_to_vmem [thread:$0]  %s335, 128, %s338, %s327
        $region36: #{tpu_custom_call.1} parent=31 // pred_fallthru
          _
        // Predicated region
        $region37: #{tpu_custom_call.1} parent=31 // pred_check
          %p341 = pneg %p78
        $region38: #{tpu_custom_call.1} parent=31 // pred_check_branch
          %343 = sbr.rel (%p341) target = $region40
        $region39: #{tpu_custom_call.1} parent=31 // pred_region
          %s344 = sand.u32 %s32, 1
          %s345 = scalar_lea.sflag [#allocation6], %s344
          %s346 = sand.u32 %s68, 1
          %s347 = smul.addr %s346, 8
          %s348 = scalar_lea.vmem [#allocation5], %s347
          %s350 = ssub.s32 128, 128
          %351 = vsyncadd %s345, %s350
          %s352 = smul.addr %s32, 128
          %s353 = scalar_lea.hbm %s1, %s352
          %s355 = sshll.u32 %s348, 4
          %s356 = int_to_ptr.vmem [resolvable:$true] %s355
          %358 = dma.hbm_to_vmem [thread:$0]  %s353, 128, %s356, %s345
        $region40: #{tpu_custom_call.1} parent=31 // pred_fallthru
          _
        // Predicated region
        $region41: #{tpu_custom_call.1} parent=31 // pred_check
          %p359 = pneg %p104
        $region42: #{tpu_custom_call.1} parent=31 // pred_check_branch
          %361 = sbr.rel (%p359) target = $region44
        $region43: #{tpu_custom_call.1} parent=31 // pred_region
          %s362 = sand.u32 %s32, 1
          %s363 = scalar_lea.sflag [#allocation6], %s362
          %s364 = sand.u32 %s94, 1
          %s365 = smul.addr %s364, 8
          %s366 = scalar_lea.vmem [#allocation7], %s365
          %s368 = ssub.s32 128, 128
          %369 = vsyncadd %s363, %s368
          %s370 = smul.addr %s32, 128
          %s371 = scalar_lea.hbm %s2, %s370
          %s373 = sshll.u32 %s366, 4
          %s374 = int_to_ptr.vmem [resolvable:$true] %s373
          %376 = dma.hbm_to_vmem [thread:$0]  %s371, 128, %s374, %s363
        $region44: #{tpu_custom_call.1} parent=31 // pred_fallthru
          _
        // Predicated region
        $region45: #{tpu_custom_call.1} parent=31 // pred_check
          %p377 = pneg %p130
        $region46: #{tpu_custom_call.1} parent=31 // pred_check_branch
          %379 = sbr.rel (%p377) target = $region48
        $region47: #{tpu_custom_call.1} parent=31 // pred_region
          %s380 = sand.u32 %s32, 1
          %s381 = scalar_lea.sflag [#allocation9], %s380
          %s382 = sand.u32 %s120, 1
          %s383 = smul.addr %s382, 8
          %s384 = scalar_lea.vmem [#allocation8], %s383
          %s386 = ssub.s32 128, 128
          %387 = vsyncadd %s381, %s386
          %s388 = smul.addr %s32, 128
          %s389 = scalar_lea.hbm %s3, %s388
          %s391 = sshll.u32 %s384, 4
          %s392 = int_to_ptr.vmem [resolvable:$true] %s391
          %394 = dma.hbm_to_vmem [thread:$0]  %s389, 128, %s392, %s381
        $region48: #{tpu_custom_call.1} parent=31 // pred_fallthru
          _
      $region32: #{tpu_custom_call.1} parent=5 // pred_fallthru
        _
      %p395 = scmp.le.s32.totalorder 1, %s32
      %p396 = scmp.lt.s32.totalorder %s32, 3
      %p397 = pnand %p395, %p396
      %p398 = pneg %p397
      // Predicated region
      $region49: #{tpu_custom_call.1} parent=5 // pred_check
        _
      $region50: #{tpu_custom_call.1} parent=5 // pred_check_branch
        %400 = sbr.rel (%p397) target = $region52
      $region51: #{tpu_custom_call.1} parent=5 // pred_region
        %s401 = ssub.s32 %s32, 1
        %s402 = sand.u32 %s45, 1
        %s403 = scalar_lea.sflag [#allocation3], %s402
        %s404 = sand.u32 %s45, 1
        %s405 = smul.addr %s404, 8
        %s406 = scalar_lea.vmem [#allocation2], %s405
        // Predicated region
        $region53: #{tpu_custom_call.1} parent=51 // pred_check
          %p407 = pneg %p58
        $region54: #{tpu_custom_call.1} parent=51 // pred_check_branch
          %409 = sbr.rel (%p407) target = $region56
        $region55: #{tpu_custom_call.1} parent=51 // pred_region
          %410 = dma.done %s403, 128
        $region56: #{tpu_custom_call.1} parent=51 // pred_fallthru
          _
        %s411 = sand.u32 %s37, 1
        %s412 = scalar_lea.sflag [#allocation6], %s411
        %s413 = sand.u32 %s71, 1
        %s414 = smul.addr %s413, 8
        %s415 = scalar_lea.vmem [#allocation5], %s414
        // Predicated region
        $region57: #{tpu_custom_call.1} parent=51 // pred_check
          %p416 = pneg %p84
        $region58: #{tpu_custom_call.1} parent=51 // pred_check_branch
          %418 = sbr.rel (%p416) target = $region60
        $region59: #{tpu_custom_call.1} parent=51 // pred_region
          %419 = dma.done %s412, 128
        $region60: #{tpu_custom_call.1} parent=51 // pred_fallthru
          _
        %s420 = sand.u32 %s37, 1
        %s421 = scalar_lea.sflag [#allocation6], %s420
        %s422 = sand.u32 %s97, 1
        %s423 = smul.addr %s422, 8
        %s424 = scalar_lea.vmem [#allocation7], %s423
        // Predicated region
        $region61: #{tpu_custom_call.1} parent=51 // pred_check
          %p425 = pneg %p110
        $region62: #{tpu_custom_call.1} parent=51 // pred_check_branch
          %427 = sbr.rel (%p425) target = $region64
        $region63: #{tpu_custom_call.1} parent=51 // pred_region
          %428 = dma.done %s421, 128
        $region64: #{tpu_custom_call.1} parent=51 // pred_fallthru
          _
        %s429 = sand.u32 %s37, 1
        %s430 = scalar_lea.sflag [#allocation9], %s429
        %s431 = sand.u32 %s123, 1
        %s432 = smul.addr %s431, 8
        %s433 = scalar_lea.vmem [#allocation8], %s432
        // Predicated region
        $region65: #{tpu_custom_call.1} parent=51 // pred_check
          %p434 = pneg %p136
        $region66: #{tpu_custom_call.1} parent=51 // pred_check_branch
          %436 = sbr.rel (%p434) target = $region68
        $region67: #{tpu_custom_call.1} parent=51 // pred_region
          %437 = dma.done %s430, 128
        $region68: #{tpu_custom_call.1} parent=51 // pred_fallthru
          _
        // Predicated region
        $region69: #{tpu_custom_call.1} parent=51 // pred_check
          %p438 = pneg %p157
        $region70: #{tpu_custom_call.1} parent=51 // pred_check_branch
          %440 = sbr.rel (%p438) target = $region72
        $region71: #{tpu_custom_call.1} parent=51 // pred_region
          %441 = dma.done [#allocation9], 1024
        $region72: #{tpu_custom_call.1} parent=51 // pred_fallthru
          _
        // Predicated region
        $region73: #{tpu_custom_call.1} parent=51 // pred_check
          %p442 = pneg %p199
        $region74: #{tpu_custom_call.1} parent=51 // pred_check_branch
          %444 = sbr.rel (%p442) target = $region76
        $region75: #{tpu_custom_call.1} parent=51 // pred_region
          %445 = dma.done [#allocation12], 2048
        $region76: #{tpu_custom_call.1} parent=51 // pred_fallthru
          _
        %s446 = sand.u32 %s45, 1
        %s447 = scalar_lea.sflag [#allocation3], %s446
        %s448 = sand.u32 %s45, 1
        %s449 = smul.addr %s448, 8
        %s450 = scalar_lea.vmem [#allocation2], %s449
        %p451 = pneg %p58
        %p452 = pneg %p55
        %s453 = sand.u32 %s37, 1
        %s454 = scalar_lea.sflag [#allocation6], %s453
        %s455 = sand.u32 %s71, 1
        %s456 = smul.addr %s455, 8
        %s457 = scalar_lea.vmem [#allocation5], %s456
        %p458 = pneg %p84
        %p459 = pneg %p81
        %s460 = sand.u32 %s37, 1
        %s461 = scalar_lea.sflag [#allocation6], %s460
        %s462 = sand.u32 %s97, 1
        %s463 = smul.addr %s462, 8
        %s464 = scalar_lea.vmem [#allocation7], %s463
        %p465 = pneg %p110
        %p466 = pneg %p107
        %s467 = sand.u32 %s37, 1
        %s468 = scalar_lea.sflag [#allocation9], %s467
        %s469 = sand.u32 %s123, 1
        %s470 = smul.addr %s469, 8
        %s471 = scalar_lea.vmem [#allocation8], %s470
        %p472 = pneg %p136
        %p473 = pneg %p133
        %p474 = pneg %p157
        %p475 = pneg %p154
        %p476 = pneg %p178
        %p477 = pneg %p175
        %p478 = pneg %p199
        %p479 = pneg %p196
        %p480 = pneg %p220
        %p481 = pneg %p217
        %p482 = pneg %p246
        %p483 = pneg %p243
        %s484 = sand.u32 %s233, 1
        %s485 = scalar_lea.sflag [#allocation4], %s484
        %s486 = sand.u32 %s233, 1
        %s487 = smul.addr %s486, 8
        %s488 = scalar_lea.vmem [#allocation13], %s487
        %p489 = pneg %p272
        %p490 = pneg %p269
        %s491 = sand.u32 %s259, 1
        %s492 = scalar_lea.sflag [#allocation15], %s491
        %s493 = sand.u32 %s259, 1
        %s494 = smul.addr %s493, 8
        %s495 = scalar_lea.vmem [#allocation14], %s494
        %v496 = vld [vmem:[%s406] sm:$0xff]
        %v497 = vld [vmem:[%s415] sm:$0xff]
        %499 = vrot.lane.b32.xlu0 %v497, 32
        %v500 = vpop.permute.xlu0 %499
        %vm502 = vcmask 261120
        %v503 = vsel %vm502, %v496, %v500
        %v504 = vld [vmem:[#allocation10] sm:$0xff]
        %v505 = vld [vmem:[#allocation10 + $0x8] sm:$0xff]
        %v506 = vld [vmem:[#allocation10 + $0x10] sm:$0xff]
        %v507 = vld [vmem:[#allocation10 + $0x18] sm:$0xff]
        %v508 = vld [vmem:[#allocation10 + $0x20] sm:$0xff]
        %v509 = vld [vmem:[#allocation10 + $0x28] sm:$0xff]
        %v510 = vld [vmem:[#allocation10 + $0x30] sm:$0xff]
        %v511 = vld [vmem:[#allocation10 + $0x38] sm:$0xff]
        %v512 = vld [vmem:[%s5] sm:$0x1]
        %v514 = vlaneseq
        %v515 = vshrl.u32 %v514, 7
        %v516 = vsub.s32 0, %v515
        %v517 = vrot.slane %v512, %v516
        %vm519 = vcmask 523264
        %v521 = vsel %vm519, %v503, 0
        %523 = vmatprep.subr.mxu0 0.0
        %524 = vmatpush1.msra.mxu0 %v504
        %525 = vmatprep.subr.mxu0 0.0
        %526 = vmatpush1.msra.mxu0 %v505
        %527 = vmatprep.subr.mxu0 0.0
        %528 = vmatpush1.msra.mxu0 %v506
        %529 = vmatprep.subr.mxu0 0.0
        %530 = vmatpush1.msra.mxu0 %v507
        %531 = vmatprep.subr.mxu0 0.0
        %532 = vmatpush1.msra.mxu0 %v508
        %533 = vmatprep.subr.mxu0 0.0
        %534 = vmatpush1.msra.mxu0 %v509
        %535 = vmatprep.subr.mxu0 0.0
        %536 = vmatpush1.msra.mxu0 %v510
        %537 = vmatprep.subr.mxu0 0.0
        %538 = vmatpush1.msra.mxu0 %v511
        %539 = vmatprep.subr.mxu0 0.0
        %540 = vmatpush1.msra.mxu0 0.0
        %541 = vmatprep.subr.mxu0 0.0
        %542 = vmatpush1.msra.mxu0 0.0
        %543 = vmatprep.subr.mxu0 0.0
        %544 = vmatpush1.msra.mxu0 0.0
        %545 = vmatprep.subr.mxu0 0.0
        %546 = vmatpush1.msra.mxu0 0.0
        %547 = vmatprep.subr.mxu0 0.0
        %548 = vmatpush1.msra.mxu0 0.0
        %549 = vmatprep.subr.mxu0 0.0
        %550 = vmatpush1.msra.mxu0 0.0
        %551 = vmatprep.subr.mxu0 0.0
        %552 = vmatpush1.msra.mxu0 0.0
        %553 = vmatprep.subr.mxu0 0.0
        %554 = vmatpush1.msra.mxu0 0.0
        %555 = vmatprep.subr.mxu0 0.0
        %556 = vmatpush1.msra.mxu0 0.0
        %557 = vmatprep.subr.mxu0 0.0
        %558 = vmatpush1.msra.mxu0 0.0
        %559 = vmatprep.subr.mxu0 0.0
        %560 = vmatpush1.msra.mxu0 0.0
        %561 = vmatprep.subr.mxu0 0.0
        %562 = vmatpush1.msra.mxu0 0.0
        %563 = vmatprep.subr.mxu0 0.0
        %564 = vmatpush1.msra.mxu0 0.0
        %565 = vmatprep.subr.mxu0 0.0
        %566 = vmatpush1.msra.mxu0 0.0
        %567 = vmatprep.subr.mxu0 0.0
        %568 = vmatpush1.msra.mxu0 0.0
        %569 = vmatprep.subr.mxu0 0.0
        %570 = vmatpush1.msra.mxu0 0.0
        %571 = vmatprep.subr.mxu0 0.0
        %572 = vmatpush1.msra.mxu0 0.0
        %573 = vmatprep.subr.mxu0 0.0
        %574 = vmatpush1.msra.mxu0 0.0
        %575 = vmatprep.subr.mxu0 0.0
        %576 = vmatpush1.msra.mxu0 0.0
        %577 = vmatprep.subr.mxu0 0.0
        %578 = vmatpush1.msra.mxu0 0.0
        %579 = vmatprep.subr.mxu0 0.0
        %580 = vmatpush1.msra.mxu0 0.0
        %581 = vmatprep.subr.mxu0 0.0
        %582 = vmatpush1.msra.mxu0 0.0
        %583 = vmatprep.subr.mxu0 0.0
        %584 = vmatpush1.msra.mxu0 0.0
        %585 = vmatprep.subr.mxu0 0.0
        %586 = vmatpush1.msra.mxu0 0.0
        %587 = vmatprep.mubr.f32.mxu0 0.0
        %588 = vmatmul.mubr.f32.gmra.mrb[0].mxu0 %v521
        %v589 = vpop.f32.mrb[0].mxu0
        %v590 = vadd.f32 %v517, %v589
        %v591 = vpop.f32.mrb[0].mxu0
        %592 = vdwg.mxu0
        %v593 = vmax.f32 %v590, 0.0
        %v594 = vld [vmem:[%s424] sm:$0xff]
        %v595 = vld [vmem:[%s433] sm:$0xff]
        %597 = vrot.lane.b32.xlu0 %v595, 32
        %v598 = vpop.permute.xlu0 %597
        %v600 = vsel %vm502, %v594, %v598
        %v602 = vsel %vm519, %v600, 0
        %604 = vmatprep.subr.mxu0 0.0
        %605 = vmatpush1.msra.mxu0 %v504
        %606 = vmatprep.subr.mxu0 0.0
        %607 = vmatpush1.msra.mxu0 %v505
        %608 = vmatprep.subr.mxu0 0.0
        %609 = vmatpush1.msra.mxu0 %v506
        %610 = vmatprep.subr.mxu0 0.0
        %611 = vmatpush1.msra.mxu0 %v507
        %612 = vmatprep.subr.mxu0 0.0
        %613 = vmatpush1.msra.mxu0 %v508
        %614 = vmatprep.subr.mxu0 0.0
        %615 = vmatpush1.msra.mxu0 %v509
        %616 = vmatprep.subr.mxu0 0.0
        %617 = vmatpush1.msra.mxu0 %v510
        %618 = vmatprep.subr.mxu0 0.0
        %619 = vmatpush1.msra.mxu0 %v511
        %620 = vmatprep.subr.mxu0 0.0
        %621 = vmatpush1.msra.mxu0 0.0
        %622 = vmatprep.subr.mxu0 0.0
        %623 = vmatpush1.msra.mxu0 0.0
        %624 = vmatprep.subr.mxu0 0.0
        %625 = vmatpush1.msra.mxu0 0.0
        %626 = vmatprep.subr.mxu0 0.0
        %627 = vmatpush1.msra.mxu0 0.0
        %628 = vmatprep.subr.mxu0 0.0
        %629 = vmatpush1.msra.mxu0 0.0
        %630 = vmatprep.subr.mxu0 0.0
        %631 = vmatpush1.msra.mxu0 0.0
        %632 = vmatprep.subr.mxu0 0.0
        %633 = vmatpush1.msra.mxu0 0.0
        %634 = vmatprep.subr.mxu0 0.0
        %635 = vmatpush1.msra.mxu0 0.0
        %636 = vmatprep.subr.mxu0 0.0
        %637 = vmatpush1.msra.mxu0 0.0
        %638 = vmatprep.subr.mxu0 0.0
        %639 = vmatpush1.msra.mxu0 0.0
        %640 = vmatprep.subr.mxu0 0.0
        %641 = vmatpush1.msra.mxu0 0.0
        %642 = vmatprep.subr.mxu0 0.0
        %643 = vmatpush1.msra.mxu0 0.0
        %644 = vmatprep.subr.mxu0 0.0
        %645 = vmatpush1.msra.mxu0 0.0
        %646 = vmatprep.subr.mxu0 0.0
        %647 = vmatpush1.msra.mxu0 0.0
        %648 = vmatprep.subr.mxu0 0.0
        %649 = vmatpush1.msra.mxu0 0.0
        %650 = vmatprep.subr.mxu0 0.0
        %651 = vmatpush1.msra.mxu0 0.0
        %652 = vmatprep.subr.mxu0 0.0
        %653 = vmatpush1.msra.mxu0 0.0
        %654 = vmatprep.subr.mxu0 0.0
        %655 = vmatpush1.msra.mxu0 0.0
        %656 = vmatprep.subr.mxu0 0.0
        %657 = vmatpush1.msra.mxu0 0.0
        %658 = vmatprep.subr.mxu0 0.0
        %659 = vmatpush1.msra.mxu0 0.0
        %660 = vmatprep.subr.mxu0 0.0
        %661 = vmatpush1.msra.mxu0 0.0
        %662 = vmatprep.subr.mxu0 0.0
        %663 = vmatpush1.msra.mxu0 0.0
        %664 = vmatprep.subr.mxu0 0.0
        %665 = vmatpush1.msra.mxu0 0.0
        %666 = vmatprep.subr.mxu0 0.0
        %667 = vmatpush1.msra.mxu0 0.0
        %668 = vmatprep.mubr.f32.mxu0 0.0
        %669 = vmatmul.mubr.f32.gmra.mrb[0].mxu0 %v602
        %v670 = vpop.f32.mrb[0].mxu0
        %v671 = vadd.f32 %v517, %v670
        %v672 = vpop.f32.mrb[0].mxu0
        %673 = vdwg.mxu0
        %v674 = vmax.f32 %v671, 0.0
        %v675 = vld [vmem:[#allocation11] sm:$0xff]
        %v676 = vld [vmem:[#allocation11 + $0x8] sm:$0xff]
        %v677 = vld [vmem:[#allocation11 + $0x10] sm:$0xff]
        %v678 = vld [vmem:[#allocation11 + $0x18] sm:$0xff]
        %v679 = vld [vmem:[#allocation11 + $0x20] sm:$0xff]
        %v680 = vld [vmem:[#allocation11 + $0x28] sm:$0xff]
        %v681 = vld [vmem:[#allocation11 + $0x30] sm:$0xff]
        %v682 = vld [vmem:[#allocation11 + $0x38] sm:$0xff]
        %v683 = vld [vmem:[#allocation11 + $0x40] sm:$0xff]
        %v684 = vld [vmem:[#allocation11 + $0x48] sm:$0xff]
        %v685 = vld [vmem:[#allocation11 + $0x50] sm:$0xff]
        %v686 = vld [vmem:[#allocation11 + $0x58] sm:$0xff]
        %v687 = vld [vmem:[#allocation11 + $0x60] sm:$0xff]
        %v688 = vld [vmem:[#allocation11 + $0x68] sm:$0xff]
        %v689 = vld [vmem:[#allocation11 + $0x70] sm:$0xff]
        %v690 = vld [vmem:[#allocation11 + $0x78] sm:$0xff]
        %v691 = vld [vmem:[%s7] sm:$0x1]
        %v693 = vlaneseq
        %v694 = vshrl.u32 %v693, 7
        %v695 = vsub.s32 0, %v694
        %v696 = vrot.slane %v691, %v695
        %698 = vmatprep.subr.mxu0 0.0
        %699 = vmatpush1.msra.mxu0 %v675
        %700 = vmatprep.subr.mxu0 0.0
        %701 = vmatpush1.msra.mxu0 %v676
        %702 = vmatprep.subr.mxu0 0.0
        %703 = vmatpush1.msra.mxu0 %v677
        %704 = vmatprep.subr.mxu0 0.0
        %705 = vmatpush1.msra.mxu0 %v678
        %706 = vmatprep.subr.mxu0 0.0
        %707 = vmatpush1.msra.mxu0 %v679
        %708 = vmatprep.subr.mxu0 0.0
        %709 = vmatpush1.msra.mxu0 %v680
        %710 = vmatprep.subr.mxu0 0.0
        %711 = vmatpush1.msra.mxu0 %v681
        %712 = vmatprep.subr.mxu0 0.0
        %713 = vmatpush1.msra.mxu0 %v682
        %714 = vmatprep.subr.mxu0 0.0
        %715 = vmatpush1.msra.mxu0 %v683
        %716 = vmatprep.subr.mxu0 0.0
        %717 = vmatpush1.msra.mxu0 %v684
        %718 = vmatprep.subr.mxu0 0.0
        %719 = vmatpush1.msra.mxu0 %v685
        %720 = vmatprep.subr.mxu0 0.0
        %721 = vmatpush1.msra.mxu0 %v686
        %722 = vmatprep.subr.mxu0 0.0
        %723 = vmatpush1.msra.mxu0 %v687
        %724 = vmatprep.subr.mxu0 0.0
        %725 = vmatpush1.msra.mxu0 %v688
        %726 = vmatprep.subr.mxu0 0.0
        %727 = vmatpush1.msra.mxu0 %v689
        %728 = vmatprep.subr.mxu0 0.0
        %729 = vmatpush1.msra.mxu0 %v690
        %730 = vmatprep.subr.mxu0 0.0
        %731 = vmatpush1.msra.mxu0 0.0
        %732 = vmatprep.subr.mxu0 0.0
        %733 = vmatpush1.msra.mxu0 0.0
        %734 = vmatprep.subr.mxu0 0.0
        %735 = vmatpush1.msra.mxu0 0.0
        %736 = vmatprep.subr.mxu0 0.0
        %737 = vmatpush1.msra.mxu0 0.0
        %738 = vmatprep.subr.mxu0 0.0
        %739 = vmatpush1.msra.mxu0 0.0
        %740 = vmatprep.subr.mxu0 0.0
        %741 = vmatpush1.msra.mxu0 0.0
        %742 = vmatprep.subr.mxu0 0.0
        %743 = vmatpush1.msra.mxu0 0.0
        %744 = vmatprep.subr.mxu0 0.0
        %745 = vmatpush1.msra.mxu0 0.0
        %746 = vmatprep.subr.mxu0 0.0
        %747 = vmatpush1.msra.mxu0 0.0
        %748 = vmatprep.subr.mxu0 0.0
        %749 = vmatpush1.msra.mxu0 0.0
        %750 = vmatprep.subr.mxu0 0.0
        %751 = vmatpush1.msra.mxu0 0.0
        %752 = vmatprep.subr.mxu0 0.0
        %753 = vmatpush1.msra.mxu0 0.0
        %754 = vmatprep.subr.mxu0 0.0
        %755 = vmatpush1.msra.mxu0 0.0
        %756 = vmatprep.subr.mxu0 0.0
        %757 = vmatpush1.msra.mxu0 0.0
        %758 = vmatprep.subr.mxu0 0.0
        %759 = vmatpush1.msra.mxu0 0.0
        %760 = vmatprep.subr.mxu0 0.0
        %761 = vmatpush1.msra.mxu0 0.0
        %762 = vmatprep.mubr.f32.mxu0 0.0
        %763 = vmatmul.mubr.f32.gmra.mrb[0].mxu0 %v593
        %v764 = vpop.f32.mrb[0].mxu0
        %v765 = vadd.f32 %v696, %v764
        %v766 = vpop.f32.mrb[0].mxu0
        %767 = vdwg.mxu0
        %v768 = vmax.f32 %v765, 0.0
        %769 = vst [vmem:[%s488] sm:$0xff] %v768
        %v770 = vld [vmem:[#allocation11] sm:$0xff]
        %v771 = vld [vmem:[#allocation11 + $0x8] sm:$0xff]
        %v772 = vld [vmem:[#allocation11 + $0x10] sm:$0xff]
        %v773 = vld [vmem:[#allocation11 + $0x18] sm:$0xff]
        %v774 = vld [vmem:[#allocation11 + $0x20] sm:$0xff]
        %v775 = vld [vmem:[#allocation11 + $0x28] sm:$0xff]
        %v776 = vld [vmem:[#allocation11 + $0x30] sm:$0xff]
        %v777 = vld [vmem:[#allocation11 + $0x38] sm:$0xff]
        %v778 = vld [vmem:[#allocation11 + $0x40] sm:$0xff]
        %v779 = vld [vmem:[#allocation11 + $0x48] sm:$0xff]
        %v780 = vld [vmem:[#allocation11 + $0x50] sm:$0xff]
        %v781 = vld [vmem:[#allocation11 + $0x58] sm:$0xff]
        %v782 = vld [vmem:[#allocation11 + $0x60] sm:$0xff]
        %v783 = vld [vmem:[#allocation11 + $0x68] sm:$0xff]
        %v784 = vld [vmem:[#allocation11 + $0x70] sm:$0xff]
        %v785 = vld [vmem:[#allocation11 + $0x78] sm:$0xff]
        %v786 = vld [vmem:[%s7] sm:$0x1]
        %v788 = vlaneseq
        %v789 = vshrl.u32 %v788, 7
        %v790 = vsub.s32 0, %v789
        %v791 = vrot.slane %v786, %v790
        %793 = vmatprep.subr.mxu0 0.0
        %794 = vmatpush1.msra.mxu0 %v770
        %795 = vmatprep.subr.mxu0 0.0
        %796 = vmatpush1.msra.mxu0 %v771
        %797 = vmatprep.subr.mxu0 0.0
        %798 = vmatpush1.msra.mxu0 %v772
        %799 = vmatprep.subr.mxu0 0.0
        %800 = vmatpush1.msra.mxu0 %v773
        %801 = vmatprep.subr.mxu0 0.0
        %802 = vmatpush1.msra.mxu0 %v774
        %803 = vmatprep.subr.mxu0 0.0
        %804 = vmatpush1.msra.mxu0 %v775
        %805 = vmatprep.subr.mxu0 0.0
        %806 = vmatpush1.msra.mxu0 %v776
        %807 = vmatprep.subr.mxu0 0.0
        %808 = vmatpush1.msra.mxu0 %v777
        %809 = vmatprep.subr.mxu0 0.0
        %810 = vmatpush1.msra.mxu0 %v778
        %811 = vmatprep.subr.mxu0 0.0
        %812 = vmatpush1.msra.mxu0 %v779
        %813 = vmatprep.subr.mxu0 0.0
        %814 = vmatpush1.msra.mxu0 %v780
        %815 = vmatprep.subr.mxu0 0.0
        %816 = vmatpush1.msra.mxu0 %v781
        %817 = vmatprep.subr.mxu0 0.0
        %818 = vmatpush1.msra.mxu0 %v782
        %819 = vmatprep.subr.mxu0 0.0
        %820 = vmatpush1.msra.mxu0 %v783
        %821 = vmatprep.subr.mxu0 0.0
        %822 = vmatpush1.msra.mxu0 %v784
        %823 = vmatprep.subr.mxu0 0.0
        %824 = vmatpush1.msra.mxu0 %v785
        %825 = vmatprep.subr.mxu0 0.0
        %826 = vmatpush1.msra.mxu0 0.0
        %827 = vmatprep.subr.mxu0 0.0
        %828 = vmatpush1.msra.mxu0 0.0
        %829 = vmatprep.subr.mxu0 0.0
        %830 = vmatpush1.msra.mxu0 0.0
        %831 = vmatprep.subr.mxu0 0.0
        %832 = vmatpush1.msra.mxu0 0.0
        %833 = vmatprep.subr.mxu0 0.0
        %834 = vmatpush1.msra.mxu0 0.0
        %835 = vmatprep.subr.mxu0 0.0
        %836 = vmatpush1.msra.mxu0 0.0
        %837 = vmatprep.subr.mxu0 0.0
        %838 = vmatpush1.msra.mxu0 0.0
        %839 = vmatprep.subr.mxu0 0.0
        %840 = vmatpush1.msra.mxu0 0.0
        %841 = vmatprep.subr.mxu0 0.0
        %842 = vmatpush1.msra.mxu0 0.0
        %843 = vmatprep.subr.mxu0 0.0
        %844 = vmatpush1.msra.mxu0 0.0
        %845 = vmatprep.subr.mxu0 0.0
        %846 = vmatpush1.msra.mxu0 0.0
        %847 = vmatprep.subr.mxu0 0.0
        %848 = vmatpush1.msra.mxu0 0.0
        %849 = vmatprep.subr.mxu0 0.0
        %850 = vmatpush1.msra.mxu0 0.0
        %851 = vmatprep.subr.mxu0 0.0
        %852 = vmatpush1.msra.mxu0 0.0
        %853 = vmatprep.subr.mxu0 0.0
        %854 = vmatpush1.msra.mxu0 0.0
        %855 = vmatprep.subr.mxu0 0.0
        %856 = vmatpush1.msra.mxu0 0.0
        %857 = vmatprep.mubr.f32.mxu0 0.0
        %858 = vmatmul.mubr.f32.gmra.mrb[0].mxu0 %v674
        %v859 = vpop.f32.mrb[0].mxu0
        %v860 = vadd.f32 %v791, %v859
        %v861 = vpop.f32.mrb[0].mxu0
        %862 = vdwg.mxu0
        %v863 = vmax.f32 %v860, 0.0
        %864 = vst [vmem:[%s495] sm:$0xff] %v863
        %s865 = sand.u32 %s233, 1
        %s866 = scalar_lea.sflag [#allocation4], %s865
        %s867 = sand.u32 %s233, 1
        %s868 = smul.addr %s867, 8
        %s869 = scalar_lea.vmem [#allocation13], %s868
        %s870 = sand.u32 %s259, 1
        %s871 = scalar_lea.sflag [#allocation15], %s870
        %s872 = sand.u32 %s259, 1
        %s873 = smul.addr %s872, 8
        %s874 = scalar_lea.vmem [#allocation14], %s873
        // Predicated region
        $region77: #{tpu_custom_call.1} parent=51 // pred_check
          %p875 = pneg %p243
        $region78: #{tpu_custom_call.1} parent=51 // pred_check_branch
          %877 = sbr.rel (%p875) target = $region80
        $region79: #{tpu_custom_call.1} parent=51 // pred_region
          %s879 = ssub.s32 128, 128
          %880 = vsyncadd %s866, %s879
          %s881 = smul.addr %s37, 128
          %s882 = scalar_lea.hbm %s8, %s881
          %s884 = sshll.u32 %s869, 4
          %s885 = int_to_ptr.vmem [resolvable:$true] %s884
          %887 = dma.vmem_to_hbm [thread:$0]  %s885, 128, %s882, %s866
        $region80: #{tpu_custom_call.1} parent=51 // pred_fallthru
          _
        // Predicated region
        $region81: #{tpu_custom_call.1} parent=51 // pred_check
          %p888 = pneg %p269
        $region82: #{tpu_custom_call.1} parent=51 // pred_check_branch
          %890 = sbr.rel (%p888) target = $region84
        $region83: #{tpu_custom_call.1} parent=51 // pred_region
          %s892 = ssub.s32 128, 128
          %893 = vsyncadd %s871, %s892
          %s894 = smul.addr %s37, 128
          %s895 = scalar_lea.hbm %s9, %s894
          %s897 = sshll.u32 %s874, 4
          %s898 = int_to_ptr.vmem [resolvable:$true] %s897
          %900 = dma.vmem_to_hbm [thread:$0]  %s898, 128, %s895, %s871
        $region84: #{tpu_custom_call.1} parent=51 // pred_fallthru
          _
      $region52: #{tpu_custom_call.1} parent=5 // pred_fallthru
        _
      %p901 = scmp.le.s32.totalorder 2, %s32
      // Predicated region
      $region85: #{tpu_custom_call.1} parent=5 // pred_check
        %p902 = pneg %p901
      $region86: #{tpu_custom_call.1} parent=5 // pred_check_branch
        %904 = sbr.rel (%p902) target = $region88
      $region87: #{tpu_custom_call.1} parent=5 // pred_region
        %s905 = ssub.s32 %s32, 2
        // Predicated region
        $region89: #{tpu_custom_call.1} parent=87 // pred_check
          %p906 = pneg %p249
        $region90: #{tpu_custom_call.1} parent=87 // pred_check_branch
          %908 = sbr.rel (%p906) target = $region92
        $region91: #{tpu_custom_call.1} parent=87 // pred_region
          %s909 = sand.u32 %s234, 1
          %s910 = scalar_lea.sflag [#allocation4], %s909
          %s911 = sand.u32 %s234, 1
          %s912 = smul.addr %s911, 8
          %s913 = scalar_lea.vmem [#allocation13], %s912
          %914 = dma.done %s910, 128
        $region92: #{tpu_custom_call.1} parent=87 // pred_fallthru
          _
        // Predicated region
        $region93: #{tpu_custom_call.1} parent=87 // pred_check
          %p915 = pneg %p275
        $region94: #{tpu_custom_call.1} parent=87 // pred_check_branch
          %917 = sbr.rel (%p915) target = $region96
        $region95: #{tpu_custom_call.1} parent=87 // pred_region
          %s918 = sand.u32 %s260, 1
          %s919 = scalar_lea.sflag [#allocation15], %s918
          %s920 = sand.u32 %s260, 1
          %s921 = smul.addr %s920, 8
          %s922 = scalar_lea.vmem [#allocation14], %s921
          %923 = dma.done %s919, 128
        $region96: #{tpu_custom_call.1} parent=87 // pred_fallthru
          _
      $region88: #{tpu_custom_call.1} parent=5 // pred_fallthru
        _
    $region6: #{tpu_custom_call.1} parent=1 // loop_footer
      %s36 = sadd.s32 1, %s32
    $region7: #{tpu_custom_call.1} parent=1 // loop_footer_branch
      %31 = sbr.rel target = $region3
    $region8: #{tpu_custom_call.1} parent=1 // loop_exit
      _
    %924 = vsyncpa [#allocation3], 1
    %s925 = scalar_lea.sflag [#allocation3], 1
    %926 = vsyncpa %s925, 1
    %927 = vsyncpa [#allocation6], 1
    %s928 = scalar_lea.sflag [#allocation6], 1
    %929 = vsyncpa %s928, 1
    %930 = vsyncpa [#allocation9], 1
    %s931 = scalar_lea.sflag [#allocation9], 1
    %932 = vsyncpa %s931, 1
    %933 = vsyncpa [#allocation12], 1
    %934 = vsyncpa [#allocation4], 1
    %s935 = scalar_lea.sflag [#allocation4], 1
    %936 = vsyncpa %s935, 1
    %937 = vsyncpa [#allocation15], 1
    %s938 = scalar_lea.sflag [#allocation15], 1
    %939 = vsyncpa %s938, 1

</llo_original>
